<compile_context>
chip_gen: v5e
topology: v5e:2x2
jax: 0.10.0
libtpu: 0.0.40
codegen_flags: <defaults>
</compile_context>

<pallas_src>
import jax
import jax.numpy as jnp
from jax.experimental import pallas as pl
from jax.experimental.pallas import tpu as pltpu

_VMEM_LIMIT = 32 * 1024 * 1024  # explicit budget; fits v7x's 32 MiB scoped default


# ----------------------------------------------------------------------------- kernels
def _qkv_proj_kernel(x_ref, w_ref, o_ref):
    # One MXU matmul over the full C contraction (K=C, not K=4); bf16 x bf16 -> f32
    # accumulate, then cast to bf16 immediately so the long-lived qkv value is half
    # the register/VMEM footprint (q-scale already folded into w columns).
    o_ref[...] = jnp.dot(x_ref[...], w_ref[...],
                         preferred_element_type=jnp.float32).astype(o_ref.dtype)


def _attn_core_kernel(q_ref, k_ref, v_ref, o_ref):
    # Blocks are (1, H, N, Dh); all heads handled by ONE batched dot_general each.
    q = q_ref[0]                                   # (H, N, Dh) bf16, already scaled
    k = k_ref[0]
    v = v_ref[0]

    # q @ k^T per head: contract Dh, batch over H -> (H, N, N) f32.
    s = jnp.einsum('hnd,hmd->hnm', q, k, preferred_element_type=jnp.float32)

    # Stable softmax along the last axis (torch.softmax(dim=-1)), f32 math; the divide
    # is an EUP approximate reciprocal (free slot).  attn_drop is identity (p=0.0).
    s = s - jnp.max(s, axis=-1, keepdims=True)
    p = jnp.exp(s)
    p = p * pl.reciprocal(jnp.sum(p, axis=-1, keepdims=True), approx=True)

    # Context per head, batched over H -> (H, N, Dh) f32, stored once as bf16.
    ctx = jnp.einsum('hnm,hmd->hnd', p.astype(v.dtype), v,
                     preferred_element_type=jnp.float32)
    o_ref[0] = ctx.astype(o_ref.dtype)


def _out_proj_kernel(x_ref, w_ref, b_ref, o_ref):
    # Single (rows, C) @ (C, C) projection with K=C plus bias; written exactly once.
    acc = jnp.dot(x_ref[...], w_ref[...], preferred_element_type=jnp.float32)
    o_ref[...] = (acc + b_ref[...]).astype(o_ref.dtype)   # proj_drop is identity


# --------------------------------------------------------------------------- utilities
def _invariant_spec(shape, single_buffer):
    """BlockSpec for a grid-invariant operand (index_map constant in the grid index).

    With single_buffer=True it requests Buffered(1): the block never changes so
    double-buffering it only wastes VMEM.
    """
    index_map = lambda i, _rank=len(shape): (0,) * _rank
    if single_buffer:
        return pl.BlockSpec(shape, index_map, pipeline_mode=pl.Buffered(1))
    return pl.BlockSpec(shape, index_map)


def _row_tile(m, target=128):
    """Largest 8-multiple tile <= target that divides m, preferring >= 2 grid steps
    (v7x has 2 TensorCores); falls back to a single full-slab step."""
    for tm in (target, target // 2, 64, 32, 16, 8):
        if tm < m and m % tm == 0 and tm % 8 == 0:
            return tm
    return m


def _matmul_rows(x2, w, bias=None, out_dtype=jnp.float32, single_buffer=True):
    """y = x2 @ w (+ bias) over a row-tiled (M, K) slab; K and output lanes stay full."""
    M, K = x2.shape
    _, Nout = w.shape
    tm = _row_tile(M)

    in_specs = [pl.BlockSpec((tm, K), lambda i: (i, 0)),
                _invariant_spec((K, Nout), single_buffer)]
    args = [x2, w]
    if bias is None:
        kernel = _qkv_proj_kernel
    else:
        in_specs.append(_invariant_spec((1, Nout), single_buffer))
        args.append(bias)
        kernel = _out_proj_kernel

    return pl.pallas_call(
        kernel,
        out_shape=jax.ShapeDtypeStruct((M, Nout), out_dtype),
        grid=(M // tm,),
        in_specs=in_specs,
        out_specs=pl.BlockSpec((tm, Nout), lambda i: (i, 0)),
        compiler_params=pltpu.CompilerParams(
            dimension_semantics=("parallel",),
            vmem_limit_bytes=_VMEM_LIMIT),
    )(*args)


def _attention_core(q, k, v):
    """q, k, v: (B, H, N, Dh) bf16 -> context (B, H, N, Dh) bf16; heads batched in-kernel."""
    B, H, N, Dh = q.shape
    blk = lambda: pl.BlockSpec((1, H, N, Dh), lambda b: (b, 0, 0, 0))
    return pl.pallas_call(
        _attn_core_kernel,
        out_shape=jax.ShapeDtypeStruct((B, H, N, Dh), jnp.bfloat16),
        grid=(B,),
        in_specs=[blk(), blk(), blk()],
        out_specs=blk(),
        compiler_params=pltpu.CompilerParams(
            dimension_semantics=("parallel",),   # B=2 -> both v7x TCs busy
            vmem_limit_bytes=_VMEM_LIMIT),
    )(q, k, v)


# ----------------------------------------------------------------------------- forward
def attention_pallas(x, w_qkv, w_proj, b_proj, num_heads, *, single_buffer_weights=True):
    """x: (B, N, C); w_qkv: (C, 3C); w_proj: (C, C); b_proj: (C,).  Matches the PyTorch
    Attention.forward (qkv_bias=False, attn_drop=proj_drop=0.0)."""
    B, N, C = x.shape
    H = num_heads
    Dh = C // H
    scale = Dh ** (-0.5)
    out_dtype = x.dtype

    # Fold the q-scale into the q columns of the QKV weight (f32, then bf16): scaling q
    # before q@k^T is exactly equivalent to scaling the (N, N) scores afterwards.
    col_scale = jnp.concatenate([jnp.full((C,), scale, jnp.float32),
                                 jnp.ones((2 * C,), jnp.float32)])
    w_qkv_bf = (w_qkv.astype(jnp.float32) * col_scale[None, :]).astype(jnp.bfloat16)
    w_proj_bf = w_proj.astype(jnp.bfloat16)
    b_proj2d = b_proj.reshape(1, C).astype(jnp.float32)   # bias add stays f32

    # ---- Stage 1: QKV projection over the flattened (B*N, C) row slab.
    x2 = x.reshape(B * N, C).astype(jnp.bfloat16)
    qkv_flat = _matmul_rows(x2, w_qkv_bf, out_dtype=jnp.bfloat16,
                            single_buffer=single_buffer_weights)          # (B*N, 3C)

    # ---- Head split / permute (the PyTorch reshape(B,N,3,H,Dh).permute(2,0,3,1,4)),
    #      done by XLA on HBM so the kernel never pays a minor-dim relayout.
    qkv5 = qkv_flat.reshape(B, N, 3, H, Dh)
    qkv5 = jnp.transpose(qkv5, (2, 0, 3, 1, 4))                           # (3,B,H,N,Dh)
    q, k, v = qkv5[0], qkv5[1], qkv5[2]

    # ---- Stage 2: per-batch attention core, all heads batched per grid step.
    ctx = _attention_core(q, k, v)                                        # (B,H,N,Dh)

    # ---- Head concat (PyTorch .transpose(1,2).reshape(B,N,C)) + Stage 3: ONE
    #      (B*N, C) @ (C, C) output projection with bias.
    ctx_flat = jnp.transpose(ctx, (0, 2, 1, 3)).reshape(B * N, C)
    out_flat = _matmul_rows(ctx_flat, w_proj_bf, bias=b_proj2d, out_dtype=out_dtype,
                            single_buffer=single_buffer_weights)          # (B*N, C)

    return out_flat.reshape(B, N, C)


# --------------------------------------------------------------------------- reference
def attention_ref(x, w_qkv, w_proj, b_proj, num_heads):
    """Pure-JAX f32 reference mirroring the PyTorch forward."""
    B, N, C = x.shape
    head_dim = C // num_heads
    scale = head_dim ** (-0.5)
    qkv = x @ w_qkv                                      # (B, N, 3C)
    qkv = qkv.reshape(B, N, 3, num_heads, head_dim)
    qkv = jnp.transpose(qkv, (2, 0, 3, 1, 4))            # (3, B, H, N, Dh)
    q, k, v = qkv[0], qkv[1], qkv[2]
    attn = jnp.einsum('bhnd,bhmd->bhnm', q, k) * scale
    attn = jax.nn.softmax(attn, axis=-1)
    out = jnp.einsum('bhnm,bhmd->bhnd', attn, v)
    out = jnp.transpose(out, (0, 2, 1, 3)).reshape(B, N, C)
    return out @ w_proj + b_proj


if __name__ == "__main__":
    # Small shapes consistent with the module: dim=C=32, num_heads=8 -> head_dim=4.
    B, N, C = 2, 8, 32
    num_heads = 8

    key = jax.random.PRNGKey(0)
    kx, k1, k2, k3 = jax.random.split(key, 4)

    x = jax.random.normal(kx, (B, N, C), dtype=jnp.float32)
    # Deterministic parameter init (Linear weights stored as (in, out)):
    w_qkv = 0.02 * jax.random.normal(k1, (C, 3 * C), dtype=jnp.float32)   # qkv_bias=False
    w_proj = 0.02 * jax.random.normal(k2, (C, C), dtype=jnp.float32)
    b_proj = 0.02 * jax.random.normal(k3, (C,), dtype=jnp.float32)

    try:
        out = jax.block_until_ready(
            attention_pallas(x, w_qkv, w_proj, b_proj, num_heads,
                             single_buffer_weights=True))
    except Exception:
        # pl.Buffered(1) single-buffering of grid-invariant weights is a pure VMEM
        # footprint optimization; fall back to default double buffering if this jax
        # version rejects buffer_count=1 so the kernel still runs.
        out = jax.block_until_ready(
            attention_pallas(x, w_qkv, w_proj, b_proj, num_heads,
                             single_buffer_weights=False))

    ref = attention_ref(x, w_qkv, w_proj, b_proj, num_heads)
    assert out.shape == (B, N, C)
    # bf16 MXU operands + approx reciprocal => relaxed tolerance vs the f32 reference.
    assert jnp.allclose(out.astype(jnp.float32), ref, atol=2e-2, rtol=2e-2), \
        "mismatch vs reference"

    print("KERNEL_OK")
</pallas_src>

<mosaic_0001>
module attributes {stable_mosaic.version = 11 : i64} {
  func.func @_qkv_proj_kernel(%arg0: i32, %arg1: memref<8x32xbf16, #tpu.memory_space<vmem>>, %arg2: memref<32x96xbf16, #tpu.memory_space<vmem>>, %arg3: memref<8x96xbf16, #tpu.memory_space<vmem>>) attributes {dimension_semantics = [#tpu.dimension_semantics<parallel>], iteration_bounds = array<i64: 2>, scalar_prefetch = 0 : i64, scratch_operands = 0 : i64, tpu.core_type = #tpu.core_type<tc>, window_params = [{transform_indices = @transform_0, window_bounds = array<i64: 8, 32>}, {pipeline_mode = #tpu.pipeline_mode<synchronous>, transform_indices = @transform_1, window_bounds = array<i64: 32, 96>}, {transform_indices = @transform_2, window_bounds = array<i64: 8, 96>}]} {
    %c0 = arith.constant 0 : index
    %c0_0 = arith.constant 0 : index
    %0 = vector.load %arg1[%c0, %c0_0] : memref<8x32xbf16, #tpu.memory_space<vmem>>, vector<8x32xbf16>
    %c0_1 = arith.constant 0 : index
    %c0_2 = arith.constant 0 : index
    %1 = vector.load %arg2[%c0_1, %c0_2] : memref<32x96xbf16, #tpu.memory_space<vmem>>, vector<32x96xbf16>
    %cst = arith.constant dense<0.000000e+00> : vector<8x96xf32>
    %2 = tpu.matmul %0, %1, %cst {dimension_numbers = #tpu.dot_dimension_numbers<[1], [0], [0], [1], [0, 0, 1, 1], [], []>} : vector<8x32xbf16>, vector<32x96xbf16>, vector<8x96xf32> -> vector<8x96xf32>
    %3 = arith.truncf %2 : vector<8x96xf32> to vector<8x96xbf16>
    %c0_3 = arith.constant 0 : index
    %c0_4 = arith.constant 0 : index
    %4 = vector.load %arg3[%c0_3, %c0_4] : memref<8x96xbf16, #tpu.memory_space<vmem>>, vector<8x96xbf16>
    tpu.vector_store %arg3[%c0_3, %c0_4], %3 {strides = array<i32>} : memref<8x96xbf16, #tpu.memory_space<vmem>>, vector<8x96xbf16>,
    return
  }
  func.func @transform_0(%arg0: i32) -> (i32, i32) {
    %c0_i32 = arith.constant 0 : i32
    %c0_i32_0 = arith.constant 0 : i32
    return %arg0, %c0_i32 : i32, i32
  }
  func.func @transform_1(%arg0: i32) -> (i32, i32) {
    %c0_i32 = arith.constant 0 : i32
    %c0_i32_0 = arith.constant 0 : i32
    %c0_i32_1 = arith.constant 0 : i32
    return %c0_i32, %c0_i32_0 : i32, i32
  }
  func.func @transform_2(%arg0: i32) -> (i32, i32) {
    %c0_i32 = arith.constant 0 : i32
    %c0_i32_0 = arith.constant 0 : i32
    return %arg0, %c0_i32 : i32, i32
  }
}

module attributes {stable_mosaic.version = 11 : i64} {
  func.func @_qkv_proj_kernel(%arg0: i32, %arg1: memref<8x32xbf16, #tpu.memory_space<vmem>>, %arg2: memref<32x96xbf16, #tpu.memory_space<vmem>>, %arg3: memref<8x96xbf16, #tpu.memory_space<vmem>>) attributes {dimension_semantics = [#tpu.dimension_semantics<parallel>], iteration_bounds = array<i64: 2>, scalar_prefetch = 0 : i64, scratch_operands = 0 : i64, tpu.core_type = #tpu.core_type<tc>, window_params = [{transform_indices = @transform_0, window_bounds = array<i64: 8, 32>}, {pipeline_mode = #tpu.pipeline_mode<synchronous>, transform_indices = @transform_1, window_bounds = array<i64: 32, 96>}, {transform_indices = @transform_2, window_bounds = array<i64: 8, 96>}]} {
    %c0 = arith.constant 0 : index
    %c0_0 = arith.constant 0 : index
    %0 = vector.load %arg1[%c0, %c0_0] : memref<8x32xbf16, #tpu.memory_space<vmem>>, vector<8x32xbf16>
    %c0_1 = arith.constant 0 : index
    %c0_2 = arith.constant 0 : index
    %1 = vector.load %arg2[%c0_1, %c0_2] : memref<32x96xbf16, #tpu.memory_space<vmem>>, vector<32x96xbf16>
    %cst = arith.constant dense<0.000000e+00> : vector<8x96xf32>
    %2 = tpu.matmul %0, %1, %cst {dimension_numbers = #tpu.dot_dimension_numbers<[1], [0], [0], [1], [0, 0, 1, 1], [], []>} : vector<8x32xbf16>, vector<32x96xbf16>, vector<8x96xf32> -> vector<8x96xf32>
    %3 = arith.truncf %2 : vector<8x96xf32> to vector<8x96xbf16>
    %c0_3 = arith.constant 0 : index
    %c0_4 = arith.constant 0 : index
    %4 = vector.load %arg3[%c0_3, %c0_4] : memref<8x96xbf16, #tpu.memory_space<vmem>>, vector<8x96xbf16>
    tpu.vector_store %arg3[%c0_3, %c0_4], %3 {strides = array<i32>} : memref<8x96xbf16, #tpu.memory_space<vmem>>, vector<8x96xbf16>,
    return
  }
  func.func @transform_0(%arg0: i32) -> (i32, i32) {
    %c0_i32 = arith.constant 0 : i32
    %c0_i32_0 = arith.constant 0 : i32
    return %arg0, %c0_i32 : i32, i32
  }
  func.func @transform_1(%arg0: i32) -> (i32, i32) {
    %c0_i32 = arith.constant 0 : i32
    %c0_i32_0 = arith.constant 0 : i32
    %c0_i32_1 = arith.constant 0 : i32
    return %c0_i32, %c0_i32_0 : i32, i32
  }
  func.func @transform_2(%arg0: i32) -> (i32, i32) {
    %c0_i32 = arith.constant 0 : i32
    %c0_i32_0 = arith.constant 0 : i32
    return %arg0, %c0_i32 : i32, i32
  }
}

</mosaic_0001>

<llo_original>
// kernel: tpu_custom_call.1
$region0: #{tpu_custom_call.1}
  #allocation0 [shape = 'u32[]', space=smem, size = 0x4, offset = 0x4, fixed_abs, tag = 'smem constant byte address 0x4 - core index']
  #allocation1 [shape = 'u32[72,128]{1,0:T(1,128)}', space=vmem, size = 0x9000, scoped, tag = 'internal scratch']
  %s0 = inlined_call_operand.hbm [shape: bf16[16,32], index: 0, kind: input, shape index: {}]
  %s1 = inlined_call_operand.hbm [shape: bf16[32,96], index: 1, kind: input, shape index: {}]
  %s2 = inlined_call_operand.hbm [shape: bf16[16,96], index: 2, kind: output, shape index: {}]
  %s3 = sld [smem:[#allocation0]]
  $region49: #{tpu_custom_call.1} parent=0
    _
  %s5 = ssub.s32 1, %s3
  %s6 = scalar_select 0, %s5, %s3
  $region1: #{tpu_custom_call.1} parent=0
    #allocation2 [shape = 'u8[4096]{0}', space=vmem, size = 0x1000, scoped, tag = 'input window, operand 0']
    #allocation3 [shape = 's32[2]{0}', space=sflag, size = 0x8, scoped, tag = 'scoped memory for tpu_custom_call.1']
    #allocation4 [shape = 's32[2]{0}', space=sflag, size = 0x8, scoped, tag = 'scoped memory for tpu_custom_call.1']
    #allocation5 [shape = 'u8[8192]{0}', space=vmem, size = 0x2000, scoped, tag = 'input window, operand 1, single buffered']
    #allocation6 [shape = 's32[1]{0}', space=sflag, size = 0x4, scoped, tag = 'scoped memory for tpu_custom_call.1']
    #allocation7 [shape = 'u8[4096]{0}', space=vmem, size = 0x1000, scoped, tag = 'output window, operand 0']
    %7 = vsyncpa [#allocation3], 0
    %s8 = scalar_lea.sflag [#allocation3], 1
    %9 = vsyncpa %s8, 0
    %10 = vsyncpa [#allocation6], 0
    %11 = vsyncpa [#allocation4], 0
    %s12 = scalar_lea.sflag [#allocation4], 1
    %13 = vsyncpa %s12, 0
    loop: start=0, step=1, limit=4
    $region2: #{tpu_custom_call.1} parent=1 // loop_pre_header
      _
    $region3: #{tpu_custom_call.1} parent=1 // loop_header
      %s15 = sphi 0, %s19
      %p16 = scmp.ge.s32.totalorder %s15, 4
      %s25 = sphi 0, %s27
      %s28 = sphi 0, %s25
      %s29 = sphi 0, %s28
      %s45 = sphi 0, %s29
      %s49 = sphi 0, %s49
      %s51 = sphi 0, %s49
      %s52 = sphi 0, %s51
      %s66 = sphi 0, %s52
      %s72 = sphi 0, %s74
      %s75 = sphi 0, %s72
      %s76 = sphi 0, %s75
      %s92 = sphi 0, %s76
    $region4: #{tpu_custom_call.1} parent=1 // loop_header_branch
      %18 = sbr.rel (%p16) target = $region8
    $region5: #{tpu_custom_call.1} parent=1 // loop_body
      %s20 = ssub.s32 %s15, 1
      %s21 = ssub.s32 %s15, 2
      %s22 = sadd.s32 %s15, 1
      %s23 = ssub.s32 %s15, %s22
      %p24 = scmp.eq.s32.totalorder %s23, 0
      %s26 = sadd.s32 %s25, 1
      %s27 = scalar_select %p24, %s25, %s26
      %p30 = pneg %p24
      %p31 = scmp.eq.s32.totalorder %s15, 1
      %p32 = por %p30, %p31
      %p33 = scmp.ne.s32.totalorder %s25, %s28
      %p34 = scmp.eq.s32.totalorder %s15, 0
      %p35 = por %p33, %p34
      %p36 = scmp.ne.s32.totalorder %s25, %s28
      %p37 = scmp.eq.s32.totalorder %s20, 1
      %p38 = por %p36, %p37
      %p39 = scmp.ne.s32.totalorder %s28, %s29
      %p40 = scmp.eq.s32.totalorder %s20, 0
      %p41 = por %p39, %p40
      %p42 = scmp.ne.s32.totalorder %s28, %s29
      %p43 = scmp.eq.s32.totalorder %s21, 1
      %p44 = por %p42, %p43
      %p46 = scmp.ne.s32.totalorder %s29, %s45
      %p47 = scmp.eq.s32.totalorder %s21, 0
      %p48 = por %p46, %p47
      %s50 = sadd.s32 %s49, 1
      %p53 = scmp.eq.s32.totalorder %s15, 1
      %p54 = scmp.ne.s32.totalorder %s49, %s51
      %p55 = scmp.eq.s32.totalorder %s15, 0
      %p56 = por %p54, %p55
      %p57 = scmp.ne.s32.totalorder %s49, %s51
      %p58 = scmp.eq.s32.totalorder %s20, 1
      %p59 = por %p57, %p58
      %p60 = scmp.ne.s32.totalorder %s51, %s52
      %p61 = scmp.eq.s32.totalorder %s20, 0
      %p62 = por %p60, %p61
      %p63 = scmp.ne.s32.totalorder %s51, %s52
      %p64 = scmp.eq.s32.totalorder %s21, 1
      %p65 = por %p63, %p64
      %p67 = scmp.ne.s32.totalorder %s52, %s66
      %p68 = scmp.eq.s32.totalorder %s21, 0
      %p69 = por %p67, %p68
      %s70 = ssub.s32 %s15, %s22
      %p71 = scmp.eq.s32.totalorder %s70, 0
      %s73 = sadd.s32 %s72, 1
      %s74 = scalar_select %p71, %s72, %s73
      %p77 = pneg %p71
      %p78 = scmp.eq.s32.totalorder %s15, 1
      %p79 = por %p77, %p78
      %p80 = scmp.ne.s32.totalorder %s72, %s75
      %p81 = scmp.eq.s32.totalorder %s15, 0
      %p82 = por %p80, %p81
      %p83 = scmp.ne.s32.totalorder %s72, %s75
      %p84 = scmp.eq.s32.totalorder %s20, 1
      %p85 = por %p83, %p84
      %p86 = scmp.ne.s32.totalorder %s75, %s76
      %p87 = scmp.eq.s32.totalorder %s20, 0
      %p88 = por %p86, %p87
      %p89 = scmp.ne.s32.totalorder %s75, %s76
      %p90 = scmp.eq.s32.totalorder %s21, 1
      %p91 = por %p89, %p90
      %p93 = scmp.ne.s32.totalorder %s76, %s92
      %p94 = scmp.eq.s32.totalorder %s21, 0
      %p95 = por %p93, %p94
      %p96 = scmp.le.s32.totalorder 1, %s15
      %p97 = scmp.lt.s32.totalorder %s15, 3
      %p98 = pnand %p96, %p97
      %p99 = pneg %p98
      // Predicated region
      $region9: #{tpu_custom_call.1} parent=5 // pred_check
        _
      $region10: #{tpu_custom_call.1} parent=5 // pred_check_branch
        %101 = sbr.rel (%p98) target = $region12
      $region11: #{tpu_custom_call.1} parent=5 // pred_region
        %s102 = ssub.s32 %s15, 1
        // Predicated region
        $region13: #{tpu_custom_call.1} parent=11 // pred_check
          %p103 = pneg %p62
        $region14: #{tpu_custom_call.1} parent=11 // pred_check_branch
          %105 = sbr.rel (%p103) target = $region16
        $region15: #{tpu_custom_call.1} parent=11 // pred_region
          %107 = vsyncadd [#allocation6], 0
          %s108 = sshll.u32 %s1, 4
          %s109 = int_to_ptr.hbm [resolvable:$true] %s108
          %s110 = sshll.u32 [#allocation5], 4
          %s111 = int_to_ptr.vmem [resolvable:$true] %s110
          %116 = dma.hbm_to_vmem [thread:$0]  %s109, 256, %s111, [#allocation6], 64, 64, 4
        $region16: #{tpu_custom_call.1} parent=11 // pred_fallthru
          _
      $region12: #{tpu_custom_call.1} parent=5 // pred_fallthru
        _
      %p117 = scmp.lt.s32.totalorder %s15, 2
      // Predicated region
      $region17: #{tpu_custom_call.1} parent=5 // pred_check
        %p118 = pneg %p117
      $region18: #{tpu_custom_call.1} parent=5 // pred_check_branch
        %120 = sbr.rel (%p118) target = $region20
      $region19: #{tpu_custom_call.1} parent=5 // pred_region
        // Predicated region
        $region21: #{tpu_custom_call.1} parent=19 // pred_check
          %p121 = pneg %p35
        $region22: #{tpu_custom_call.1} parent=19 // pred_check_branch
          %123 = sbr.rel (%p121) target = $region24
        $region23: #{tpu_custom_call.1} parent=19 // pred_region
          %s124 = sand.u32 %s25, 1
          %s125 = scalar_lea.sflag [#allocation3], %s124
          %s126 = sand.u32 %s25, 1
          %s127 = smul.addr %s126, 4
          %s128 = scalar_lea.vmem [#allocation2], %s127
          %130 = vsyncadd %s125, 0
          %s131 = smul.addr %s15, 4
          %s132 = scalar_lea.hbm %s0, %s131
          %s134 = sshll.u32 %s132, 4
          %s135 = int_to_ptr.hbm [resolvable:$true] %s134
          %s136 = sshll.u32 %s128, 4
          %s137 = int_to_ptr.vmem [resolvable:$true] %s136
          %139 = dma.hbm_to_vmem [thread:$0]  %s135, 64, %s137, %s125
        $region24: #{tpu_custom_call.1} parent=19 // pred_fallthru
          _
      $region20: #{tpu_custom_call.1} parent=5 // pred_fallthru
        _
      %p140 = scmp.le.s32.totalorder 1, %s15
      %p141 = scmp.lt.s32.totalorder %s15, 3
      %p142 = pnand %p140, %p141
      %p143 = pneg %p142
      // Predicated region
      $region25: #{tpu_custom_call.1} parent=5 // pred_check
        _
      $region26: #{tpu_custom_call.1} parent=5 // pred_check_branch
        %145 = sbr.rel (%p142) target = $region28
      $region27: #{tpu_custom_call.1} parent=5 // pred_region
        %s146 = ssub.s32 %s15, 1
        %s147 = sand.u32 %s28, 1
        %s148 = scalar_lea.sflag [#allocation3], %s147
        %s149 = sand.u32 %s28, 1
        %s150 = smul.addr %s149, 4
        %s151 = scalar_lea.vmem [#allocation2], %s150
        // Predicated region
        $region29: #{tpu_custom_call.1} parent=27 // pred_check
          %p152 = pneg %p41
        $region30: #{tpu_custom_call.1} parent=27 // pred_check_branch
          %154 = sbr.rel (%p152) target = $region32
        $region31: #{tpu_custom_call.1} parent=27 // pred_region
          %156 = dma.done %s148, 64
        $region32: #{tpu_custom_call.1} parent=27 // pred_fallthru
          _
        // Predicated region
        $region33: #{tpu_custom_call.1} parent=27 // pred_check
          %p157 = pneg %p62
        $region34: #{tpu_custom_call.1} parent=27 // pred_check_branch
          %159 = sbr.rel (%p157) target = $region36
        $region35: #{tpu_custom_call.1} parent=27 // pred_region
          %161 = dma.done [#allocation6], 256
        $region36: #{tpu_custom_call.1} parent=27 // pred_fallthru
          _
        %s162 = sand.u32 %s28, 1
        %s163 = scalar_lea.sflag [#allocation3], %s162
        %s164 = sand.u32 %s28, 1
        %s165 = smul.addr %s164, 4
        %s166 = scalar_lea.vmem [#allocation2], %s165
        %p167 = pneg %p41
        %p168 = pneg %p38
        %p169 = pneg %p62
        %p170 = pneg %p59
        %p171 = pneg %p88
        %p172 = pneg %p85
        %s173 = sand.u32 %s75, 1
        %s174 = scalar_lea.sflag [#allocation4], %s173
        %s175 = sand.u32 %s75, 1
        %s176 = smul.addr %s175, 4
        %s177 = scalar_lea.vmem [#allocation7], %s176
        %v179 = vld [vmem:[%s151] sm:$0xf]
        %v180 = vld [vmem:[#allocation5] sm:$0xf]
        %v181 = vld [vmem:[#allocation5 + $0x4] sm:$0xf]
        %v182 = vld [vmem:[#allocation5 + $0x8] sm:$0xf]
        %v183 = vld [vmem:[#allocation5 + $0xc] sm:$0xf]
        %v188 = vunpack.c.l.b16 %v180
        %v189 = vunpack.c.l.b16 %v181
        %v190 = vunpack.c.l.b16 %v182
        %v191 = vunpack.c.l.b16 %v183
        %v192 = vpack.c.b16 %v189, %v188
        %v193 = vpack.c.b16 %v191, %v190
        %vm196 = vcmask 261120
        %v198 = vsel %vm196, %v179, 0
        %200 = vmatpush.bf16.msra.mxu0 0
        %201 = vmatpush.bf16.msra.mxu0 0
        %202 = vmatpush.bf16.msra.mxu0 0
        %203 = vmatpush.bf16.msra.mxu0 0
        %204 = vmatpush.bf16.msra.mxu0 0
        %205 = vmatpush.bf16.msra.mxu0 0
        %206 = vmatpush.bf16.msra.mxu0 %v193
        %207 = vmatpush.bf16.msra.mxu0 %v192
        %208 = vmatmul.bf16.gmra.mxu0 %v198
        %v209 = vpop.f32.mrf.mxu0
        %v210 = vadd.f32 0.0, %v209
        %v211 = vpop.f32.mrf.mxu0
        %212 = vdwg.mxu0
        %v213 = vpack.c.bf16 %v210, %v210
        %vm214 = vcmask 781312
        %215 = vst.msk [vmem:[%s177] sm:$0xf] %vm214, %v213
        %s216 = sand.u32 %s75, 1
        %s217 = scalar_lea.sflag [#allocation4], %s216
        %s218 = sand.u32 %s75, 1
        %s219 = smul.addr %s218, 4
        %s220 = scalar_lea.vmem [#allocation7], %s219
        // Predicated region
        $region37: #{tpu_custom_call.1} parent=27 // pred_check
          %p221 = pneg %p85
        $region38: #{tpu_custom_call.1} parent=27 // pred_check_branch
          %223 = sbr.rel (%p221) target = $region40
        $region39: #{tpu_custom_call.1} parent=27 // pred_region
          %225 = vsyncadd %s217, 0
          %s226 = smul.addr %s20, 4
          %s227 = scalar_lea.hbm %s2, %s226
          %s229 = sshll.u32 %s220, 4
          %s230 = int_to_ptr.vmem [resolvable:$true] %s229
          %s231 = sshll.u32 %s227, 4
          %s232 = int_to_ptr.hbm [resolvable:$true] %s231
          %234 = dma.vmem_to_hbm [thread:$0]  %s230, 64, %s232, %s217
        $region40: #{tpu_custom_call.1} parent=27 // pred_fallthru
          _
      $region28: #{tpu_custom_call.1} parent=5 // pred_fallthru
        _
      %p235 = scmp.le.s32.totalorder 2, %s15
      // Predicated region
      $region41: #{tpu_custom_call.1} parent=5 // pred_check
        %p236 = pneg %p235
      $region42: #{tpu_custom_call.1} parent=5 // pred_check_branch
        %238 = sbr.rel (%p236) target = $region44
      $region43: #{tpu_custom_call.1} parent=5 // pred_region
        %s239 = ssub.s32 %s15, 2
        // Predicated region
        $region45: #{tpu_custom_call.1} parent=43 // pred_check
          %p240 = pneg %p91
        $region46: #{tpu_custom_call.1} parent=43 // pred_check_branch
          %242 = sbr.rel (%p240) target = $region48
        $region47: #{tpu_custom_call.1} parent=43 // pred_region
          %s243 = sand.u32 %s76, 1
          %s244 = scalar_lea.sflag [#allocation4], %s243
          %s245 = sand.u32 %s76, 1
          %s246 = smul.addr %s245, 4
          %s247 = scalar_lea.vmem [#allocation7], %s246
          %249 = dma.done %s244, 64
        $region48: #{tpu_custom_call.1} parent=43 // pred_fallthru
          _
      $region44: #{tpu_custom_call.1} parent=5 // pred_fallthru
        _
    $region6: #{tpu_custom_call.1} parent=1 // loop_footer
      %s19 = sadd.s32 1, %s15
    $region7: #{tpu_custom_call.1} parent=1 // loop_footer_branch
      %14 = sbr.rel target = $region3
    $region8: #{tpu_custom_call.1} parent=1 // loop_exit
      _
    %250 = vsyncpa [#allocation3], 1
    %s251 = scalar_lea.sflag [#allocation3], 1
    %252 = vsyncpa %s251, 1
    %253 = vsyncpa [#allocation6], 1
    %254 = vsyncpa [#allocation4], 1
    %s255 = scalar_lea.sflag [#allocation4], 1
    %256 = vsyncpa %s255, 1

// kernel: tpu_custom_call.1
$region0: #{tpu_custom_call.1}
  #allocation0 [shape = 'u32[]', space=smem, size = 0x4, offset = 0x4, fixed_abs, tag = 'smem constant byte address 0x4 - core index']
  #allocation1 [shape = 'u32[72,128]{1,0:T(1,128)}', space=vmem, size = 0x9000, scoped, tag = 'internal scratch']
  %s0 = inlined_call_operand.hbm [shape: bf16[16,32], index: 0, kind: input, shape index: {}]
  %s1 = inlined_call_operand.hbm [shape: bf16[32,96], index: 1, kind: input, shape index: {}]
  %s2 = inlined_call_operand.hbm [shape: bf16[16,96], index: 2, kind: output, shape index: {}]
  %s3 = sld [smem:[#allocation0]]
  $region49: #{tpu_custom_call.1} parent=0
    _
  %s5 = ssub.s32 1, %s3
  %s6 = scalar_select 0, %s5, %s3
  $region1: #{tpu_custom_call.1} parent=0
    #allocation2 [shape = 'u8[4096]{0}', space=vmem, size = 0x1000, scoped, tag = 'input window, operand 0']
    #allocation3 [shape = 's32[2]{0}', space=sflag, size = 0x8, scoped, tag = 'scoped memory for tpu_custom_call.1']
    #allocation4 [shape = 's32[2]{0}', space=sflag, size = 0x8, scoped, tag = 'scoped memory for tpu_custom_call.1']
    #allocation5 [shape = 'u8[8192]{0}', space=vmem, size = 0x2000, scoped, tag = 'input window, operand 1, single buffered']
    #allocation6 [shape = 's32[1]{0}', space=sflag, size = 0x4, scoped, tag = 'scoped memory for tpu_custom_call.1']
    #allocation7 [shape = 'u8[4096]{0}', space=vmem, size = 0x1000, scoped, tag = 'output window, operand 0']
    %7 = vsyncpa [#allocation3], 0
    %s8 = scalar_lea.sflag [#allocation3], 1
    %9 = vsyncpa %s8, 0
    %10 = vsyncpa [#allocation6], 0
    %11 = vsyncpa [#allocation4], 0
    %s12 = scalar_lea.sflag [#allocation4], 1
    %13 = vsyncpa %s12, 0
    loop: start=0, step=1, limit=4
    $region2: #{tpu_custom_call.1} parent=1 // loop_pre_header
      _
    $region3: #{tpu_custom_call.1} parent=1 // loop_header
      %s15 = sphi 0, %s19
      %p16 = scmp.ge.s32.totalorder %s15, 4
      %s25 = sphi 0, %s27
      %s28 = sphi 0, %s25
      %s29 = sphi 0, %s28
      %s45 = sphi 0, %s29
      %s49 = sphi 0, %s49
      %s51 = sphi 0, %s49
      %s52 = sphi 0, %s51
      %s66 = sphi 0, %s52
      %s72 = sphi 0, %s74
      %s75 = sphi 0, %s72
      %s76 = sphi 0, %s75
      %s92 = sphi 0, %s76
    $region4: #{tpu_custom_call.1} parent=1 // loop_header_branch
      %18 = sbr.rel (%p16) target = $region8
    $region5: #{tpu_custom_call.1} parent=1 // loop_body
      %s20 = ssub.s32 %s15, 1
      %s21 = ssub.s32 %s15, 2
      %s22 = sadd.s32 %s15, 1
      %s23 = ssub.s32 %s15, %s22
      %p24 = scmp.eq.s32.totalorder %s23, 0
      %s26 = sadd.s32 %s25, 1
      %s27 = scalar_select %p24, %s25, %s26
      %p30 = pneg %p24
      %p31 = scmp.eq.s32.totalorder %s15, 1
      %p32 = por %p30, %p31
      %p33 = scmp.ne.s32.totalorder %s25, %s28
      %p34 = scmp.eq.s32.totalorder %s15, 0
      %p35 = por %p33, %p34
      %p36 = scmp.ne.s32.totalorder %s25, %s28
      %p37 = scmp.eq.s32.totalorder %s20, 1
      %p38 = por %p36, %p37
      %p39 = scmp.ne.s32.totalorder %s28, %s29
      %p40 = scmp.eq.s32.totalorder %s20, 0
      %p41 = por %p39, %p40
      %p42 = scmp.ne.s32.totalorder %s28, %s29
      %p43 = scmp.eq.s32.totalorder %s21, 1
      %p44 = por %p42, %p43
      %p46 = scmp.ne.s32.totalorder %s29, %s45
      %p47 = scmp.eq.s32.totalorder %s21, 0
      %p48 = por %p46, %p47
      %s50 = sadd.s32 %s49, 1
      %p53 = scmp.eq.s32.totalorder %s15, 1
      %p54 = scmp.ne.s32.totalorder %s49, %s51
      %p55 = scmp.eq.s32.totalorder %s15, 0
      %p56 = por %p54, %p55
      %p57 = scmp.ne.s32.totalorder %s49, %s51
      %p58 = scmp.eq.s32.totalorder %s20, 1
      %p59 = por %p57, %p58
      %p60 = scmp.ne.s32.totalorder %s51, %s52
      %p61 = scmp.eq.s32.totalorder %s20, 0
      %p62 = por %p60, %p61
      %p63 = scmp.ne.s32.totalorder %s51, %s52
      %p64 = scmp.eq.s32.totalorder %s21, 1
      %p65 = por %p63, %p64
      %p67 = scmp.ne.s32.totalorder %s52, %s66
      %p68 = scmp.eq.s32.totalorder %s21, 0
      %p69 = por %p67, %p68
      %s70 = ssub.s32 %s15, %s22
      %p71 = scmp.eq.s32.totalorder %s70, 0
      %s73 = sadd.s32 %s72, 1
      %s74 = scalar_select %p71, %s72, %s73
      %p77 = pneg %p71
      %p78 = scmp.eq.s32.totalorder %s15, 1
      %p79 = por %p77, %p78
      %p80 = scmp.ne.s32.totalorder %s72, %s75
      %p81 = scmp.eq.s32.totalorder %s15, 0
      %p82 = por %p80, %p81
      %p83 = scmp.ne.s32.totalorder %s72, %s75
      %p84 = scmp.eq.s32.totalorder %s20, 1
      %p85 = por %p83, %p84
      %p86 = scmp.ne.s32.totalorder %s75, %s76
      %p87 = scmp.eq.s32.totalorder %s20, 0
      %p88 = por %p86, %p87
      %p89 = scmp.ne.s32.totalorder %s75, %s76
      %p90 = scmp.eq.s32.totalorder %s21, 1
      %p91 = por %p89, %p90
      %p93 = scmp.ne.s32.totalorder %s76, %s92
      %p94 = scmp.eq.s32.totalorder %s21, 0
      %p95 = por %p93, %p94
      %p96 = scmp.le.s32.totalorder 1, %s15
      %p97 = scmp.lt.s32.totalorder %s15, 3
      %p98 = pnand %p96, %p97
      %p99 = pneg %p98
      // Predicated region
      $region9: #{tpu_custom_call.1} parent=5 // pred_check
        _
      $region10: #{tpu_custom_call.1} parent=5 // pred_check_branch
        %101 = sbr.rel (%p98) target = $region12
      $region11: #{tpu_custom_call.1} parent=5 // pred_region
        %s102 = ssub.s32 %s15, 1
        // Predicated region
        $region13: #{tpu_custom_call.1} parent=11 // pred_check
          %p103 = pneg %p62
        $region14: #{tpu_custom_call.1} parent=11 // pred_check_branch
          %105 = sbr.rel (%p103) target = $region16
        $region15: #{tpu_custom_call.1} parent=11 // pred_region
          %107 = vsyncadd [#allocation6], 0
          %s108 = sshll.u32 %s1, 4
          %s109 = int_to_ptr.hbm [resolvable:$true] %s108
          %s110 = sshll.u32 [#allocation5], 4
          %s111 = int_to_ptr.vmem [resolvable:$true] %s110
          %116 = dma.hbm_to_vmem [thread:$0]  %s109, 256, %s111, [#allocation6], 64, 64, 4
        $region16: #{tpu_custom_call.1} parent=11 // pred_fallthru
          _
      $region12: #{tpu_custom_call.1} parent=5 // pred_fallthru
        _
      %p117 = scmp.lt.s32.totalorder %s15, 2
      // Predicated region
      $region17: #{tpu_custom_call.1} parent=5 // pred_check
        %p118 = pneg %p117
      $region18: #{tpu_custom_call.1} parent=5 // pred_check_branch
        %120 = sbr.rel (%p118) target = $region20
      $region19: #{tpu_custom_call.1} parent=5 // pred_region
        // Predicated region
        $region21: #{tpu_custom_call.1} parent=19 // pred_check
          %p121 = pneg %p35
        $region22: #{tpu_custom_call.1} parent=19 // pred_check_branch
          %123 = sbr.rel (%p121) target = $region24
        $region23: #{tpu_custom_call.1} parent=19 // pred_region
          %s124 = sand.u32 %s25, 1
          %s125 = scalar_lea.sflag [#allocation3], %s124
          %s126 = sand.u32 %s25, 1
          %s127 = smul.addr %s126, 4
          %s128 = scalar_lea.vmem [#allocation2], %s127
          %130 = vsyncadd %s125, 0
          %s131 = smul.addr %s15, 4
          %s132 = scalar_lea.hbm %s0, %s131
          %s134 = sshll.u32 %s132, 4
          %s135 = int_to_ptr.hbm [resolvable:$true] %s134
          %s136 = sshll.u32 %s128, 4
          %s137 = int_to_ptr.vmem [resolvable:$true] %s136
          %139 = dma.hbm_to_vmem [thread:$0]  %s135, 64, %s137, %s125
        $region24: #{tpu_custom_call.1} parent=19 // pred_fallthru
          _
      $region20: #{tpu_custom_call.1} parent=5 // pred_fallthru
        _
      %p140 = scmp.le.s32.totalorder 1, %s15
      %p141 = scmp.lt.s32.totalorder %s15, 3
      %p142 = pnand %p140, %p141
      %p143 = pneg %p142
      // Predicated region
      $region25: #{tpu_custom_call.1} parent=5 // pred_check
        _
      $region26: #{tpu_custom_call.1} parent=5 // pred_check_branch
        %145 = sbr.rel (%p142) target = $region28
      $region27: #{tpu_custom_call.1} parent=5 // pred_region
        %s146 = ssub.s32 %s15, 1
        %s147 = sand.u32 %s28, 1
        %s148 = scalar_lea.sflag [#allocation3], %s147
        %s149 = sand.u32 %s28, 1
        %s150 = smul.addr %s149, 4
        %s151 = scalar_lea.vmem [#allocation2], %s150
        // Predicated region
        $region29: #{tpu_custom_call.1} parent=27 // pred_check
          %p152 = pneg %p41
        $region30: #{tpu_custom_call.1} parent=27 // pred_check_branch
          %154 = sbr.rel (%p152) target = $region32
        $region31: #{tpu_custom_call.1} parent=27 // pred_region
          %156 = dma.done %s148, 64
        $region32: #{tpu_custom_call.1} parent=27 // pred_fallthru
          _
        // Predicated region
        $region33: #{tpu_custom_call.1} parent=27 // pred_check
          %p157 = pneg %p62
        $region34: #{tpu_custom_call.1} parent=27 // pred_check_branch
          %159 = sbr.rel (%p157) target = $region36
        $region35: #{tpu_custom_call.1} parent=27 // pred_region
          %161 = dma.done [#allocation6], 256
        $region36: #{tpu_custom_call.1} parent=27 // pred_fallthru
          _
        %s162 = sand.u32 %s28, 1
        %s163 = scalar_lea.sflag [#allocation3], %s162
        %s164 = sand.u32 %s28, 1
        %s165 = smul.addr %s164, 4
        %s166 = scalar_lea.vmem [#allocation2], %s165
        %p167 = pneg %p41
        %p168 = pneg %p38
        %p169 = pneg %p62
        %p170 = pneg %p59
        %p171 = pneg %p88
        %p172 = pneg %p85
        %s173 = sand.u32 %s75, 1
        %s174 = scalar_lea.sflag [#allocation4], %s173
        %s175 = sand.u32 %s75, 1
        %s176 = smul.addr %s175, 4
        %s177 = scalar_lea.vmem [#allocation7], %s176
        %v179 = vld [vmem:[%s151] sm:$0xf]
        %v180 = vld [vmem:[#allocation5] sm:$0xf]
        %v181 = vld [vmem:[#allocation5 + $0x4] sm:$0xf]
        %v182 = vld [vmem:[#allocation5 + $0x8] sm:$0xf]
        %v183 = vld [vmem:[#allocation5 + $0xc] sm:$0xf]
        %v188 = vunpack.c.l.b16 %v180
        %v189 = vunpack.c.l.b16 %v181
        %v190 = vunpack.c.l.b16 %v182
        %v191 = vunpack.c.l.b16 %v183
        %v192 = vpack.c.b16 %v189, %v188
        %v193 = vpack.c.b16 %v191, %v190
        %vm196 = vcmask 261120
        %v198 = vsel %vm196, %v179, 0
        %200 = vmatpush.bf16.msra.mxu0 0
        %201 = vmatpush.bf16.msra.mxu0 0
        %202 = vmatpush.bf16.msra.mxu0 0
        %203 = vmatpush.bf16.msra.mxu0 0
        %204 = vmatpush.bf16.msra.mxu0 0
        %205 = vmatpush.bf16.msra.mxu0 0
        %206 = vmatpush.bf16.msra.mxu0 %v193
        %207 = vmatpush.bf16.msra.mxu0 %v192
        %208 = vmatmul.bf16.gmra.mxu0 %v198
        %v209 = vpop.f32.mrf.mxu0
        %v210 = vadd.f32 0.0, %v209
        %v211 = vpop.f32.mrf.mxu0
        %212 = vdwg.mxu0
        %v213 = vpack.c.bf16 %v210, %v210
        %vm214 = vcmask 781312
        %215 = vst.msk [vmem:[%s177] sm:$0xf] %vm214, %v213
        %s216 = sand.u32 %s75, 1
        %s217 = scalar_lea.sflag [#allocation4], %s216
        %s218 = sand.u32 %s75, 1
        %s219 = smul.addr %s218, 4
        %s220 = scalar_lea.vmem [#allocation7], %s219
        // Predicated region
        $region37: #{tpu_custom_call.1} parent=27 // pred_check
          %p221 = pneg %p85
        $region38: #{tpu_custom_call.1} parent=27 // pred_check_branch
          %223 = sbr.rel (%p221) target = $region40
        $region39: #{tpu_custom_call.1} parent=27 // pred_region
          %225 = vsyncadd %s217, 0
          %s226 = smul.addr %s20, 4
          %s227 = scalar_lea.hbm %s2, %s226
          %s229 = sshll.u32 %s220, 4
          %s230 = int_to_ptr.vmem [resolvable:$true] %s229
          %s231 = sshll.u32 %s227, 4
          %s232 = int_to_ptr.hbm [resolvable:$true] %s231
          %234 = dma.vmem_to_hbm [thread:$0]  %s230, 64, %s232, %s217
        $region40: #{tpu_custom_call.1} parent=27 // pred_fallthru
          _
      $region28: #{tpu_custom_call.1} parent=5 // pred_fallthru
        _
      %p235 = scmp.le.s32.totalorder 2, %s15
      // Predicated region
      $region41: #{tpu_custom_call.1} parent=5 // pred_check
        %p236 = pneg %p235
      $region42: #{tpu_custom_call.1} parent=5 // pred_check_branch
        %238 = sbr.rel (%p236) target = $region44
      $region43: #{tpu_custom_call.1} parent=5 // pred_region
        %s239 = ssub.s32 %s15, 2
        // Predicated region
        $region45: #{tpu_custom_call.1} parent=43 // pred_check
          %p240 = pneg %p91
        $region46: #{tpu_custom_call.1} parent=43 // pred_check_branch
          %242 = sbr.rel (%p240) target = $region48
        $region47: #{tpu_custom_call.1} parent=43 // pred_region
          %s243 = sand.u32 %s76, 1
          %s244 = scalar_lea.sflag [#allocation4], %s243
          %s245 = sand.u32 %s76, 1
          %s246 = smul.addr %s245, 4
          %s247 = scalar_lea.vmem [#allocation7], %s246
          %249 = dma.done %s244, 64
        $region48: #{tpu_custom_call.1} parent=43 // pred_fallthru
          _
      $region44: #{tpu_custom_call.1} parent=5 // pred_fallthru
        _
    $region6: #{tpu_custom_call.1} parent=1 // loop_footer
      %s19 = sadd.s32 1, %s15
    $region7: #{tpu_custom_call.1} parent=1 // loop_footer_branch
      %14 = sbr.rel target = $region3
    $region8: #{tpu_custom_call.1} parent=1 // loop_exit
      _
    %250 = vsyncpa [#allocation3], 1
    %s251 = scalar_lea.sflag [#allocation3], 1
    %252 = vsyncpa %s251, 1
    %253 = vsyncpa [#allocation6], 1
    %254 = vsyncpa [#allocation4], 1
    %s255 = scalar_lea.sflag [#allocation4], 1
    %256 = vsyncpa %s255, 1

</llo_original>
